<compile_context>
chip_gen: v7x
topology: tpu7x:2x2x1
jax: 0.10.0
libtpu: 0.0.40
codegen_flags: <defaults>
</compile_context>

<pallas_src>
import functools

import jax
import jax.numpy as jnp
from jax.experimental import pallas as pl
from jax.experimental.pallas import tpu as pltpu


_LN_EPS = 1e-5
_SLACK_BYTES = 2 << 20          # compiler/internal scratch slack in the budget


# --------------------------------------------------------------------------- #
# Kernel bodies
# --------------------------------------------------------------------------- #
def _fusion_core(parts_bf, w1_parts, wg_parts, w2_ref, wgt_ref, vecs_ref):
    """Shared math.

    parts_bf : tuple of bf16 activations whose (virtual) concat is `original`.
    w1_parts / wg_parts : matching K-row blocks of W1 / Wg_original.
    Returns (transformed, gate), both (tm, 3H) float32.
    """
    b1 = vecs_ref[0:1, :]
    gamma = vecs_ref[1:2, :]
    beta = vecs_ref[2:3, :]
    b2 = vecs_ref[3:4, :]
    bg = vecs_ref[4:5, :]

    def dot(x, w_ref):
        return jnp.dot(x, w_ref[...], preferred_element_type=jnp.float32)

    # Linear1 over the virtual concat: orig @ W1 == sum_j part_j @ W1_j.
    h = b1
    for x, w in zip(parts_bf, w1_parts):
        h = h + dot(x, w)

    # LayerNorm (single-pass statistics) -> ReLU.  Dropout = identity (eval).
    mean = jnp.mean(h, axis=-1, keepdims=True)
    msq = jnp.mean(h * h, axis=-1, keepdims=True)
    var = jnp.maximum(msq - mean * mean, 0.0)
    h = (h - mean) * jax.lax.rsqrt(var + _LN_EPS) * gamma + beta
    h = jnp.maximum(h, 0.0)

    transformed = dot(h.astype(jnp.bfloat16), w2_ref) + b2

    # gate = sigmoid(concat([orig, transformed]) @ Wg + bg), with the 6H->3H
    # weight pre-split so no concat is ever materialized.
    g = bg + dot(transformed.astype(jnp.bfloat16), wgt_ref)
    for x, w in zip(parts_bf, wg_parts):
        g = g + dot(x, w)
    gate = jax.nn.sigmoid(g)

    return transformed, gate


def _kernel_fused(t_ref, q_ref, a_ref,
                  w1a_ref, w1b_ref, w1c_ref, w2_ref,
                  wga_ref, wgb_ref, wgc_ref, wgt_ref,
                  vecs_ref, out_ref, *, hidden):
    """Lane-aligned H: no concat anywhere; per-third blend/store."""
    parts_f32 = (t_ref[...], q_ref[...], a_ref[...])
    parts_bf = tuple(p.astype(jnp.bfloat16) for p in parts_f32)

    transformed, gate = _fusion_core(
        parts_bf, (w1a_ref, w1b_ref, w1c_ref), (wga_ref, wgb_ref, wgc_ref),
        w2_ref, wgt_ref, vecs_ref)

    # out = orig + gate * (transformed - orig), written per 128-aligned third.
    for j, s in enumerate(parts_f32):
        lo = j * hidden
        tr_j = transformed[:, lo:lo + hidden]
        g_j = gate[:, lo:lo + hidden]
        out_ref[:, lo:lo + hidden] = s + g_j * (tr_j - s)


def _kernel_preconcat(orig_ref, w1_ref, w2_ref, wgo_ref, wgt_ref,
                      vecs_ref, out_ref):
    """Fallback for non-lane-aligned H: `original` was concatenated host-side."""
    orig = orig_ref[...]
    transformed, gate = _fusion_core(
        (orig.astype(jnp.bfloat16),), (w1_ref,), (wgo_ref,),
        w2_ref, wgt_ref, vecs_ref)
    out_ref[...] = orig + gate * (transformed - orig)


# --------------------------------------------------------------------------- #
# Wrapper
# --------------------------------------------------------------------------- #
def _round_up(x, m):
    return ((x + m - 1) // m) * m


def _device_vmem_capacity_bytes():
    # Only steers tile-size selection and the vmem_limit hint; correctness never
    # depends on it, so fall back to the smallest real capacity (v7x, 64 MiB/TC).
    try:
        return int(pltpu.get_tpu_info().vmem_capacity_bytes)
    except Exception:
        return 64 << 20


def _tile_bytes(tm, hidden, d3):
    # Double-buffered streamed tiles (3x(tm,H) in + (tm,3H) out, both f32) plus
    # ~6 f32 (tm,3H) intermediates (h, transformed, gate, casts, blend temps).
    io = 2 * (3 * tm * hidden + tm * d3) * 4
    tmp = 6 * tm * d3 * 4
    return io + tmp


def residual_fusion(text, quad, attn, params, *, tm=None):
    """text/quad/attn: (B, S, H) float32.  Returns (B, S, 3H) float32."""
    B, S, H = text.shape
    D3 = 3 * H
    N = B * S

    w1, b1, gamma, beta, w2, b2, wg, bg = params
    bf = jnp.bfloat16

    # Pack the five (3H,) vectors into one (8, 3H) f32 block (single operand).
    vecs = jnp.zeros((8, D3), jnp.float32)
    vecs = (vecs.at[0].set(b1).at[1].set(gamma).at[2].set(beta)
                .at[3].set(b2).at[4].set(bg))

    # ---- VMEM budget (per TensorCore) & row-tile selection ------------------ #
    weight_bytes = 4 * D3 * D3 * 2 + vecs.size * 4      # bf16 weights + vecs
    capacity = _device_vmem_capacity_bytes()
    budget = int(0.9 * capacity)                         # ~10% headroom

    if tm is None:
        tm = 8
        for cand in (256, 128, 64, 32, 16, 8):           # 128 on v7x, 256 on v5e/v6e
            if weight_bytes + _tile_bytes(cand, H, D3) + _SLACK_BYTES <= budget:
                tm = cand
                break

    tm_eff = max(8, min(_round_up(tm, 8), _round_up(N, 8)))
    n_pad = _round_up(N, tm_eff)
    grid = (n_pad // tm_eff,)

    vmem_limit = int(min(
        max(weight_bytes + _tile_bytes(tm_eff, H, D3) + _SLACK_BYTES, 32 << 20),
        budget))

    # ---- data / weight operands and specs ----------------------------------- #
    def flat_pad(x, width):
        x = x.reshape(N, width)
        if n_pad != N:
            x = jnp.pad(x, ((0, n_pad - N), (0, 0)))
        return x

    fused = (H % 128 == 0)
    if fused:
        data_args = (flat_pad(text, H), flat_pad(quad, H), flat_pad(attn, H))
        data_specs = [pl.BlockSpec((tm_eff, H), lambda i: (i, 0))] * 3
        weight_args = (
            w1[0:H].astype(bf), w1[H:2 * H].astype(bf), w1[2 * H:D3].astype(bf),
            w2.astype(bf),
            wg[0:H].astype(bf), wg[H:2 * H].astype(bf), wg[2 * H:D3].astype(bf),
            wg[D3:].astype(bf),
            vecs)
        kernel = functools.partial(_kernel_fused, hidden=H)
    else:
        original = flat_pad(jnp.concatenate([text, quad, attn], axis=-1), D3)
        data_args = (original,)
        data_specs = [pl.BlockSpec((tm_eff, D3), lambda i: (i, 0))]
        weight_args = (w1.astype(bf), w2.astype(bf),
                       wg[:D3].astype(bf), wg[D3:].astype(bf), vecs)
        kernel = _kernel_preconcat

    # Whole-array VMEM placement: one resident copy, outside the pipeline.
    weight_specs = [pl.BlockSpec(memory_space=pltpu.MemorySpace.VMEM)
                    for _ in weight_args]

    cost = pl.CostEstimate(
        flops=4 * 2 * n_pad * D3 * D3 + 12 * n_pad * D3,
        transcendentals=n_pad * D3 + n_pad,              # sigmoid + per-row rsqrt
        bytes_accessed=(3 * n_pad * H + n_pad * D3) * 4 + weight_bytes,
    )

    out = pl.pallas_call(
        kernel,
        out_shape=jax.ShapeDtypeStruct((n_pad, D3), jnp.float32),
        grid_spec=pltpu.PrefetchScalarGridSpec(
            num_scalar_prefetch=0,
            grid=grid,
            in_specs=list(data_specs) + weight_specs,
            out_specs=pl.BlockSpec((tm_eff, D3), lambda i: (i, 0)),
        ),
        compiler_params=pltpu.CompilerParams(
            dimension_semantics=("parallel",),
            vmem_limit_bytes=vmem_limit),
        cost_estimate=cost,
    )(*data_args, *weight_args)

    return out[:N].reshape(B, S, D3)


# --------------------------------------------------------------------------- #
# References
# --------------------------------------------------------------------------- #
def reference_f32(text, quad, attn, params):
    (w1, b1, gamma, beta, w2, b2, wg, bg) = params
    orig = jnp.concatenate([text, quad, attn], axis=-1)
    h = orig @ w1 + b1
    mu = h.mean(-1, keepdims=True)
    var = ((h - mu) ** 2).mean(-1, keepdims=True)
    h = (h - mu) / jnp.sqrt(var + _LN_EPS) * gamma + beta
    h = jnp.maximum(h, 0.0)
    transformed = h @ w2 + b2
    gate = jax.nn.sigmoid(jnp.concatenate([orig, transformed], -1) @ wg + bg)
    return gate * transformed + (1 - gate) * orig


def reference_bf16(text, quad, attn, params):
    """Mirrors the kernel's bf16-weight / f32-accumulate precision contract."""
    (w1, b1, gamma, beta, w2, b2, wg, bg) = params
    D3 = w1.shape[0]
    bf = jnp.bfloat16
    dot = lambda x, w: jnp.dot(x.astype(bf), w.astype(bf),
                               preferred_element_type=jnp.float32)
    orig = jnp.concatenate([text, quad, attn], axis=-1)
    h = dot(orig, w1) + b1
    mu = h.mean(-1, keepdims=True)
    var = ((h - mu) ** 2).mean(-1, keepdims=True)
    h = (h - mu) * jax.lax.rsqrt(var + _LN_EPS) * gamma + beta
    h = jnp.maximum(h, 0.0)
    transformed = dot(h, w2) + b2
    gate = jax.nn.sigmoid(dot(orig, wg[:D3]) + dot(transformed, wg[D3:]) + bg)
    return gate * transformed + (1 - gate) * orig


def init_params(key, hidden_size):
    D3, D6 = 3 * hidden_size, 6 * hidden_size
    ks = jax.random.split(key, 6)
    scale = 0.05
    w1 = scale * jax.random.normal(ks[0], (D3, D3), jnp.float32)
    b1 = scale * jax.random.normal(ks[1], (D3,), jnp.float32)
    gamma = jnp.ones((D3,), jnp.float32)
    beta = jnp.zeros((D3,), jnp.float32)
    w2 = scale * jax.random.normal(ks[2], (D3, D3), jnp.float32)
    b2 = scale * jax.random.normal(ks[3], (D3,), jnp.float32)
    wg = scale * jax.random.normal(ks[4], (D6, D3), jnp.float32)
    bg = scale * jax.random.normal(ks[5], (D3,), jnp.float32)
    return (w1, b1, gamma, beta, w2, b2, wg, bg)


# --------------------------------------------------------------------------- #
# Self-test
# --------------------------------------------------------------------------- #
if __name__ == "__main__":
    key = jax.random.PRNGKey(0)

    # --- test 1: H not lane-aligned -> wrapper-side concat fallback --------- #
    B, S, H = 2, 8, 32
    k_t, k_q, k_a, k_p, key = jax.random.split(key, 5)
    text = jax.random.normal(k_t, (B, S, H), jnp.float32)
    quad = jax.random.normal(k_q, (B, S, H), jnp.float32)
    attn = jax.random.normal(k_a, (B, S, H), jnp.float32)
    params = init_params(k_p, H)

    out = jax.block_until_ready(residual_fusion(text, quad, attn, params))
    assert out.shape == (B, S, 3 * H)
    assert jnp.allclose(out, reference_bf16(text, quad, attn, params),
                        atol=5e-3, rtol=5e-3), "mismatch vs bf16 reference (1)"
    assert jnp.allclose(out, reference_f32(text, quad, attn, params),
                        atol=5e-2, rtol=5e-2), "mismatch vs f32 reference (1)"

    # --- test 2: lane-aligned H -> fused concat-free path + row padding ----- #
    B2, S2, H2 = 1, 5, 128        # N=5 also exercises ragged-row zero padding
    k_t, k_q, k_a, k_p = jax.random.split(key, 4)
    text2 = jax.random.normal(k_t, (B2, S2, H2), jnp.float32)
    quad2 = jax.random.normal(k_q, (B2, S2, H2), jnp.float32)
    attn2 = jax.random.normal(k_a, (B2, S2, H2), jnp.float32)
    params2 = init_params(k_p, H2)

    out2 = jax.block_until_ready(residual_fusion(text2, quad2, attn2, params2))
    assert out2.shape == (B2, S2, 3 * H2)
    assert jnp.allclose(out2, reference_bf16(text2, quad2, attn2, params2),
                        atol=5e-3, rtol=5e-3), "mismatch vs bf16 reference (2)"
    assert jnp.allclose(out2, reference_f32(text2, quad2, attn2, params2),
                        atol=5e-2, rtol=5e-2), "mismatch vs f32 reference (2)"

    print("KERNEL_OK")
</pallas_src>

<mosaic_0001>
module attributes {stable_mosaic.version = 11 : i64} {
  func.func @_kernel_preconcat(%arg0: i32, %arg1: memref<16x96xf32, #tpu.memory_space<vmem>>, %arg2: memref<96x96xbf16, #tpu.memory_space<vmem>>, %arg3: memref<96x96xbf16, #tpu.memory_space<vmem>>, %arg4: memref<96x96xbf16, #tpu.memory_space<vmem>>, %arg5: memref<96x96xbf16, #tpu.memory_space<vmem>>, %arg6: memref<8x96xf32, #tpu.memory_space<vmem>>, %arg7: memref<16x96xf32, #tpu.memory_space<vmem>>) attributes {dimension_semantics = [#tpu.dimension_semantics<parallel>], iteration_bounds = array<i64: 1>, scalar_prefetch = 0 : i64, scratch_operands = 0 : i64, tpu.core_type = #tpu.core_type<tc>, window_params = [{transform_indices = @transform_0, window_bounds = array<i64: 16, 96>}, {pipeline_mode = #tpu.pipeline_mode<synchronous>, transform_indices = @transform_1, window_bounds = array<i64: 96, 96>}, {pipeline_mode = #tpu.pipeline_mode<synchronous>, transform_indices = @transform_2, window_bounds = array<i64: 96, 96>}, {pipeline_mode = #tpu.pipeline_mode<synchronous>, transform_indices = @transform_3, window_bounds = array<i64: 96, 96>}, {pipeline_mode = #tpu.pipeline_mode<synchronous>, transform_indices = @transform_4, window_bounds = array<i64: 96, 96>}, {pipeline_mode = #tpu.pipeline_mode<synchronous>, transform_indices = @transform_5, window_bounds = array<i64: 8, 96>}, {transform_indices = @transform_6, window_bounds = array<i64: 16, 96>}]} {
    %c0 = arith.constant 0 : index
    %c0_0 = arith.constant 0 : index
    %0 = vector.load %arg1[%c0, %c0_0] : memref<16x96xf32, #tpu.memory_space<vmem>>, vector<16x96xf32>
    %1 = arith.truncf %0 : vector<16x96xf32> to vector<16x96xbf16>
    %c0_1 = arith.constant 0 : index
    %c0_2 = arith.constant 0 : index
    %2 = vector.load %arg6[%c0_1, %c0_2] : memref<8x96xf32, #tpu.memory_space<vmem>>, vector<1x96xf32>
    %c1 = arith.constant 1 : index
    %c0_3 = arith.constant 0 : index
    %3 = vector.load %arg6[%c1, %c0_3] : memref<8x96xf32, #tpu.memory_space<vmem>>, vector<1x96xf32>
    %c2 = arith.constant 2 : index
    %c0_4 = arith.constant 0 : index
    %4 = vector.load %arg6[%c2, %c0_4] : memref<8x96xf32, #tpu.memory_space<vmem>>, vector<1x96xf32>
    %c3 = arith.constant 3 : index
    %c0_5 = arith.constant 0 : index
    %5 = vector.load %arg6[%c3, %c0_5] : memref<8x96xf32, #tpu.memory_space<vmem>>, vector<1x96xf32>
    %c4 = arith.constant 4 : index
    %c0_6 = arith.constant 0 : index
    %6 = vector.load %arg6[%c4, %c0_6] : memref<8x96xf32, #tpu.memory_space<vmem>>, vector<1x96xf32>
    %c0_7 = arith.constant 0 : index
    %c0_8 = arith.constant 0 : index
    %7 = vector.load %arg2[%c0_7, %c0_8] : memref<96x96xbf16, #tpu.memory_space<vmem>>, vector<96x96xbf16>
    %cst = arith.constant dense<0.000000e+00> : vector<16x96xf32>
    %8 = tpu.matmul %1, %7, %cst {dimension_numbers = #tpu.dot_dimension_numbers<[1], [0], [0], [1], [0, 0, 1, 1], [], []>} : vector<16x96xbf16>, vector<96x96xbf16>, vector<16x96xf32> -> vector<16x96xf32>
    %9 = vector.broadcast %2 : vector<1x96xf32> to vector<16x96xf32>
    %10 = arith.addf %9, %8 : vector<16x96xf32>
    %cst_9 = arith.constant dense<0.000000e+00> : vector<16xf32>
    %11 = vector.multi_reduction <add>, %10, %cst_9 [1] : vector<16x96xf32> to vector<16xf32>
    %12 = vector.shape_cast %11 : vector<16xf32> to vector<16x1xf32>
    %cst_10 = arith.constant 9.600000e+01 : f32
    %13 = vector.broadcast %cst_10 : f32 to vector<16x1xf32>
    %14 = arith.divf %12, %13 : vector<16x1xf32>
    %15 = arith.mulf %10, %10 : vector<16x96xf32>
    %cst_11 = arith.constant dense<0.000000e+00> : vector<16xf32>
    %16 = vector.multi_reduction <add>, %15, %cst_11 [1] : vector<16x96xf32> to vector<16xf32>
    %17 = vector.shape_cast %16 : vector<16xf32> to vector<16x1xf32>
    %cst_12 = arith.constant 9.600000e+01 : f32
    %18 = vector.broadcast %cst_12 : f32 to vector<16x1xf32>
    %19 = arith.divf %17, %18 : vector<16x1xf32>
    %20 = arith.mulf %14, %14 : vector<16x1xf32>
    %21 = arith.subf %19, %20 : vector<16x1xf32>
    %cst_13 = arith.constant 0.000000e+00 : f32
    %22 = vector.broadcast %cst_13 : f32 to vector<16x1xf32>
    %23 = arith.maximumf %21, %22 : vector<16x1xf32>
    %24 = vector.broadcast %14 : vector<16x1xf32> to vector<16x96xf32>
    %25 = arith.subf %10, %24 : vector<16x96xf32>
    %cst_14 = arith.constant 9.99999974E-6 : f32
    %26 = vector.broadcast %cst_14 : f32 to vector<16x1xf32>
    %27 = arith.addf %23, %26 : vector<16x1xf32>
    %28 = math.rsqrt %27 : vector<16x1xf32>
    %29 = vector.broadcast %28 : vector<16x1xf32> to vector<16x96xf32>
    %30 = arith.mulf %25, %29 : vector<16x96xf32>
    %31 = vector.broadcast %3 : vector<1x96xf32> to vector<16x96xf32>
    %32 = arith.mulf %30, %31 : vector<16x96xf32>
    %33 = vector.broadcast %4 : vector<1x96xf32> to vector<16x96xf32>
    %34 = arith.addf %32, %33 : vector<16x96xf32>
    %cst_15 = arith.constant 0.000000e+00 : f32
    %35 = vector.broadcast %cst_15 : f32 to vector<16x96xf32>
    %36 = arith.maximumf %34, %35 : vector<16x96xf32>
    %37 = arith.truncf %36 : vector<16x96xf32> to vector<16x96xbf16>
    %c0_16 = arith.constant 0 : index
    %c0_17 = arith.constant 0 : index
    %38 = vector.load %arg3[%c0_16, %c0_17] : memref<96x96xbf16, #tpu.memory_space<vmem>>, vector<96x96xbf16>
    %cst_18 = arith.constant dense<0.000000e+00> : vector<16x96xf32>
    %39 = tpu.matmul %37, %38, %cst_18 {dimension_numbers = #tpu.dot_dimension_numbers<[1], [0], [0], [1], [0, 0, 1, 1], [], []>} : vector<16x96xbf16>, vector<96x96xbf16>, vector<16x96xf32> -> vector<16x96xf32>
    %40 = vector.broadcast %5 : vector<1x96xf32> to vector<16x96xf32>
    %41 = arith.addf %39, %40 : vector<16x96xf32>
    %42 = arith.truncf %41 : vector<16x96xf32> to vector<16x96xbf16>
    %c0_19 = arith.constant 0 : index
    %c0_20 = arith.constant 0 : index
    %43 = vector.load %arg5[%c0_19, %c0_20] : memref<96x96xbf16, #tpu.memory_space<vmem>>, vector<96x96xbf16>
    %cst_21 = arith.constant dense<0.000000e+00> : vector<16x96xf32>
    %44 = tpu.matmul %42, %43, %cst_21 {dimension_numbers = #tpu.dot_dimension_numbers<[1], [0], [0], [1], [0, 0, 1, 1], [], []>} : vector<16x96xbf16>, vector<96x96xbf16>, vector<16x96xf32> -> vector<16x96xf32>
    %45 = vector.broadcast %6 : vector<1x96xf32> to vector<16x96xf32>
    %46 = arith.addf %45, %44 : vector<16x96xf32>
    %c0_22 = arith.constant 0 : index
    %c0_23 = arith.constant 0 : index
    %47 = vector.load %arg4[%c0_22, %c0_23] : memref<96x96xbf16, #tpu.memory_space<vmem>>, vector<96x96xbf16>
    %cst_24 = arith.constant dense<0.000000e+00> : vector<16x96xf32>
    %48 = tpu.matmul %1, %47, %cst_24 {dimension_numbers = #tpu.dot_dimension_numbers<[1], [0], [0], [1], [0, 0, 1, 1], [], []>} : vector<16x96xbf16>, vector<96x96xbf16>, vector<16x96xf32> -> vector<16x96xf32>
    %49 = arith.addf %46, %48 : vector<16x96xf32>
    %50 = arith.negf %49 : vector<16x96xf32>
    %51 = math.exp %50 : vector<16x96xf32>
    %cst_25 = arith.constant 1.000000e+00 : f32
    %52 = vector.broadcast %cst_25 : f32 to vector<16x96xf32>
    %53 = arith.addf %52, %51 : vector<16x96xf32>
    %54 = arith.divf %52, %53 : vector<16x96xf32>
    %55 = arith.subf %41, %0 : vector<16x96xf32>
    %56 = arith.mulf %54, %55 : vector<16x96xf32>
    %57 = arith.addf %0, %56 : vector<16x96xf32>
    %c0_26 = arith.constant 0 : index
    %c0_27 = arith.constant 0 : index
    %58 = vector.load %arg7[%c0_26, %c0_27] : memref<16x96xf32, #tpu.memory_space<vmem>>, vector<16x96xf32>
    tpu.vector_store %arg7[%c0_26, %c0_27], %57 {strides = array<i32>} : memref<16x96xf32, #tpu.memory_space<vmem>>, vector<16x96xf32>,
    return
  }
  func.func @transform_0(%arg0: i32) -> (i32, i32) {
    %c0_i32 = arith.constant 0 : i32
    %c0_i32_0 = arith.constant 0 : i32
    return %arg0, %c0_i32 : i32, i32
  }
  func.func @transform_1(%arg0: i32) -> (i32, i32) {
    %c0_i32 = arith.constant 0 : i32
    %c0_i32_0 = arith.constant 0 : i32
    %c0_i32_1 = arith.constant 0 : i32
    return %c0_i32, %c0_i32_0 : i32, i32
  }
  func.func @transform_2(%arg0: i32) -> (i32, i32) {
    %c0_i32 = arith.constant 0 : i32
    %c0_i32_0 = arith.constant 0 : i32
    %c0_i32_1 = arith.constant 0 : i32
    return %c0_i32, %c0_i32_0 : i32, i32
  }
  func.func @transform_3(%arg0: i32) -> (i32, i32) {
    %c0_i32 = arith.constant 0 : i32
    %c0_i32_0 = arith.constant 0 : i32
    %c0_i32_1 = arith.constant 0 : i32
    return %c0_i32, %c0_i32_0 : i32, i32
  }
  func.func @transform_4(%arg0: i32) -> (i32, i32) {
    %c0_i32 = arith.constant 0 : i32
    %c0_i32_0 = arith.constant 0 : i32
    %c0_i32_1 = arith.constant 0 : i32
    return %c0_i32, %c0_i32_0 : i32, i32
  }
  func.func @transform_5(%arg0: i32) -> (i32, i32) {
    %c0_i32 = arith.constant 0 : i32
    %c0_i32_0 = arith.constant 0 : i32
    %c0_i32_1 = arith.constant 0 : i32
    return %c0_i32, %c0_i32_0 : i32, i32
  }
  func.func @transform_6(%arg0: i32) -> (i32, i32) {
    %c0_i32 = arith.constant 0 : i32
    %c0_i32_0 = arith.constant 0 : i32
    return %arg0, %c0_i32 : i32, i32
  }
}

</mosaic_0001>

<llo_original>
// kernel: tpu_custom_call.1
$region0: #{tpu_custom_call.1}
  #allocation0 [shape = 'u32[]', space=smem, size = 0x4, offset = 0x4, fixed_abs, tag = 'smem constant byte address 0x4 - core index']
  #allocation1 [shape = 'u32[144,128]{1,0:T(1,128)}', space=vmem, size = 0x12000, scoped, tag = 'internal scratch']
  %s0 = inlined_call_operand.hbm [shape: f32[16,96], index: 0, kind: input, shape index: {}]
  %s1 = inlined_call_operand.hbm [shape: bf16[96,96], index: 1, kind: input, shape index: {}]
  %s2 = inlined_call_operand.hbm [shape: bf16[96,96], index: 2, kind: input, shape index: {}]
  %s3 = inlined_call_operand.hbm [shape: bf16[96,96], index: 3, kind: input, shape index: {}]
  %s4 = inlined_call_operand.hbm [shape: bf16[96,96], index: 4, kind: input, shape index: {}]
  %s5 = inlined_call_operand.vmem [shape: f32[8,96], index: 5, kind: input, shape index: {}]
  %s6 = inlined_call_operand.hbm [shape: f32[16,96], index: 6, kind: output, shape index: {}]
  %s7 = sld [smem:[#allocation0]]
  $region54: #{tpu_custom_call.1} parent=0
    _
  %s9 = ssub.s32 1, %s7
  %s10 = scalar_select 0, %s9, %s7
  $region1: #{tpu_custom_call.1} parent=0
    #allocation2 [shape = 'u8[8192]{0}', space=vmem, size = 0x2000, scoped, tag = 'input window, operand 0, single buffered']
    #allocation3 [shape = 's32[1]{0}', space=sflag, size = 0x4, scoped, tag = 'scoped memory for tpu_custom_call.1']
    #allocation4 [shape = 's32[1]{0}', space=sflag, size = 0x4, scoped, tag = 'scoped memory for tpu_custom_call.1']
    #allocation5 [shape = 'u8[24576]{0}', space=vmem, size = 0x6000, scoped, tag = 'input window, operand 1, single buffered']
    #allocation6 [shape = 's32[1]{0}', space=sflag, size = 0x4, scoped, tag = 'scoped memory for tpu_custom_call.1']
    #allocation7 [shape = 'u8[24576]{0}', space=vmem, size = 0x6000, scoped, tag = 'input window, operand 2, single buffered']
    #allocation8 [shape = 'u8[24576]{0}', space=vmem, size = 0x6000, scoped, tag = 'input window, operand 3, single buffered']
    #allocation9 [shape = 's32[1]{0}', space=sflag, size = 0x4, scoped, tag = 'scoped memory for tpu_custom_call.1']
    #allocation10 [shape = 'u8[24576]{0}', space=vmem, size = 0x6000, scoped, tag = 'input window, operand 4, single buffered']
    #allocation11 [shape = 'u8[8192]{0}', space=vmem, size = 0x2000, scoped, tag = 'output window, operand 0, single buffered']
    %11 = vsyncpa [#allocation3], 0
    %12 = vsyncpa [#allocation6], 0
    %13 = vsyncpa [#allocation9], 0
    %14 = vsyncpa [#allocation4], 0
    // Predicated region
    $region2: #{tpu_custom_call.1} parent=1 // pred_check
      _
    $region3: #{tpu_custom_call.1} parent=1 // pred_check_branch
      %16 = sbr.rel (0) target = $region5
    $region4: #{tpu_custom_call.1} parent=1 // pred_region
      %s18 = ssub.s32 256, 256
      %19 = vsyncadd [#allocation3], %s18
      %s20 = sshll.u32 [#allocation2], 4
      %s21 = int_to_ptr.vmem [resolvable:$true] %s20
      %26 = dma.hbm_to_vmem [thread:$0]  %s0, 256, %s21, [#allocation3], 128, 128, 8
    $region5: #{tpu_custom_call.1} parent=1 // pred_fallthru
      _
    // Predicated region
    $region6: #{tpu_custom_call.1} parent=1 // pred_check
      _
    $region7: #{tpu_custom_call.1} parent=1 // pred_check_branch
      %28 = sbr.rel (0) target = $region9
    $region8: #{tpu_custom_call.1} parent=1 // pred_region
      %s30 = ssub.s32 768, 768
      %31 = vsyncadd [#allocation6], %s30
      %s32 = sshll.u32 [#allocation5], 4
      %s33 = int_to_ptr.vmem [resolvable:$true] %s32
      %38 = dma.hbm_to_vmem [thread:$0]  %s1, 768, %s33, [#allocation6], 64, 64, 4
    $region9: #{tpu_custom_call.1} parent=1 // pred_fallthru
      _
    // Predicated region
    $region10: #{tpu_custom_call.1} parent=1 // pred_check
      _
    $region11: #{tpu_custom_call.1} parent=1 // pred_check_branch
      %40 = sbr.rel (0) target = $region13
    $region12: #{tpu_custom_call.1} parent=1 // pred_region
      %s42 = ssub.s32 768, 768
      %43 = vsyncadd [#allocation6], %s42
      %s44 = sshll.u32 [#allocation7], 4
      %s45 = int_to_ptr.vmem [resolvable:$true] %s44
      %50 = dma.hbm_to_vmem [thread:$0]  %s2, 768, %s45, [#allocation6], 64, 64, 4
    $region13: #{tpu_custom_call.1} parent=1 // pred_fallthru
      _
    // Predicated region
    $region14: #{tpu_custom_call.1} parent=1 // pred_check
      _
    $region15: #{tpu_custom_call.1} parent=1 // pred_check_branch
      %52 = sbr.rel (0) target = $region17
    $region16: #{tpu_custom_call.1} parent=1 // pred_region
      %s54 = ssub.s32 768, 768
      %55 = vsyncadd [#allocation9], %s54
      %s56 = sshll.u32 [#allocation8], 4
      %s57 = int_to_ptr.vmem [resolvable:$true] %s56
      %62 = dma.hbm_to_vmem [thread:$0]  %s3, 768, %s57, [#allocation9], 64, 64, 4
    $region17: #{tpu_custom_call.1} parent=1 // pred_fallthru
      _
    // Predicated region
    $region18: #{tpu_custom_call.1} parent=1 // pred_check
      _
    $region19: #{tpu_custom_call.1} parent=1 // pred_check_branch
      %64 = sbr.rel (0) target = $region21
    $region20: #{tpu_custom_call.1} parent=1 // pred_region
      %s66 = ssub.s32 768, 768
      %67 = vsyncadd [#allocation9], %s66
      %s68 = sshll.u32 [#allocation10], 4
      %s69 = int_to_ptr.vmem [resolvable:$true] %s68
      %74 = dma.hbm_to_vmem [thread:$0]  %s4, 768, %s69, [#allocation9], 64, 64, 4
    $region21: #{tpu_custom_call.1} parent=1 // pred_fallthru
      _
    // Predicated region
    $region22: #{tpu_custom_call.1} parent=1 // pred_check
      _
    $region23: #{tpu_custom_call.1} parent=1 // pred_check_branch
      %76 = sbr.rel (0) target = $region25
    $region24: #{tpu_custom_call.1} parent=1 // pred_region
      _
    $region25: #{tpu_custom_call.1} parent=1 // pred_fallthru
      _
    // Predicated region
    $region26: #{tpu_custom_call.1} parent=1 // pred_check
      _
    $region27: #{tpu_custom_call.1} parent=1 // pred_check_branch
      %78 = sbr.rel (0) target = $region29
    $region28: #{tpu_custom_call.1} parent=1 // pred_region
      %79 = dma.done [#allocation3], 256
    $region29: #{tpu_custom_call.1} parent=1 // pred_fallthru
      _
    // Predicated region
    $region30: #{tpu_custom_call.1} parent=1 // pred_check
      _
    $region31: #{tpu_custom_call.1} parent=1 // pred_check_branch
      %81 = sbr.rel (0) target = $region33
    $region32: #{tpu_custom_call.1} parent=1 // pred_region
      %82 = dma.done [#allocation6], 768
    $region33: #{tpu_custom_call.1} parent=1 // pred_fallthru
      _
    // Predicated region
    $region34: #{tpu_custom_call.1} parent=1 // pred_check
      _
    $region35: #{tpu_custom_call.1} parent=1 // pred_check_branch
      %84 = sbr.rel (0) target = $region37
    $region36: #{tpu_custom_call.1} parent=1 // pred_region
      %85 = dma.done [#allocation6], 768
    $region37: #{tpu_custom_call.1} parent=1 // pred_fallthru
      _
    // Predicated region
    $region38: #{tpu_custom_call.1} parent=1 // pred_check
      _
    $region39: #{tpu_custom_call.1} parent=1 // pred_check_branch
      %87 = sbr.rel (0) target = $region41
    $region40: #{tpu_custom_call.1} parent=1 // pred_region
      %88 = dma.done [#allocation9], 768
    $region41: #{tpu_custom_call.1} parent=1 // pred_fallthru
      _
    // Predicated region
    $region42: #{tpu_custom_call.1} parent=1 // pred_check
      _
    $region43: #{tpu_custom_call.1} parent=1 // pred_check_branch
      %90 = sbr.rel (0) target = $region45
    $region44: #{tpu_custom_call.1} parent=1 // pred_region
      %91 = dma.done [#allocation9], 768
    $region45: #{tpu_custom_call.1} parent=1 // pred_fallthru
      _
    %v93 = vld [vmem:[#allocation2] sm:$0xff]
    %v94 = vld [vmem:[#allocation2 + $0x8] sm:$0xff]
    %v95 = vpack.c.bf16 %v94, %v93
    %v96 = vld [vmem:[%s5] sm:$0x1]
    %v97 = vld [vmem:[%s5 + $0x1] sm:$0x1]
    %v98 = vld [vmem:[%s5 + $0x2] sm:$0x1]
    %v99 = vld [vmem:[%s5 + $0x3] sm:$0x1]
    %v100 = vld [vmem:[%s5 + $0x4] sm:$0x1]
    %v101 = vld [vmem:[#allocation5] sm:$0xf]
    %v102 = vld [vmem:[#allocation5 + $0x4] sm:$0xf]
    %v103 = vld [vmem:[#allocation5 + $0x8] sm:$0xf]
    %v104 = vld [vmem:[#allocation5 + $0xc] sm:$0xf]
    %v105 = vld [vmem:[#allocation5 + $0x10] sm:$0xf]
    %v106 = vld [vmem:[#allocation5 + $0x14] sm:$0xf]
    %v107 = vld [vmem:[#allocation5 + $0x18] sm:$0xf]
    %v108 = vld [vmem:[#allocation5 + $0x1c] sm:$0xf]
    %v109 = vld [vmem:[#allocation5 + $0x20] sm:$0xf]
    %v110 = vld [vmem:[#allocation5 + $0x24] sm:$0xf]
    %v111 = vld [vmem:[#allocation5 + $0x28] sm:$0xf]
    %v112 = vld [vmem:[#allocation5 + $0x2c] sm:$0xf]
    %v125 = vunpack.c.l.b16 %v101
    %v126 = vunpack.c.l.b16 %v102
    %v127 = vunpack.c.l.b16 %v103
    %v128 = vunpack.c.l.b16 %v104
    %v129 = vunpack.c.l.b16 %v105
    %v130 = vunpack.c.l.b16 %v106
    %v131 = vunpack.c.l.b16 %v107
    %v132 = vunpack.c.l.b16 %v108
    %v133 = vunpack.c.l.b16 %v109
    %v134 = vunpack.c.l.b16 %v110
    %v135 = vunpack.c.l.b16 %v111
    %v136 = vunpack.c.l.b16 %v112
    %v137 = vpack.c.b16 %v126, %v125
    %v138 = vpack.c.b16 %v128, %v127
    %v139 = vpack.c.b16 %v130, %v129
    %v140 = vpack.c.b16 %v132, %v131
    %v141 = vpack.c.b16 %v134, %v133
    %v142 = vpack.c.b16 %v136, %v135
    %vm149 = vcmask 785408
    %v151 = vsel %vm149, %v95, 0
    %153 = vmatprep.subr.bf16.mxu0 0
    %154 = vmatpush1.bf16.msra.mxu0 %v137
    %155 = vmatprep.subr.bf16.mxu0 0
    %156 = vmatpush1.bf16.msra.mxu0 %v138
    %157 = vmatprep.subr.bf16.mxu0 0
    %158 = vmatpush1.bf16.msra.mxu0 %v139
    %159 = vmatprep.subr.bf16.mxu0 0
    %160 = vmatpush1.bf16.msra.mxu0 %v140
    %161 = vmatprep.subr.bf16.mxu0 0
    %162 = vmatpush1.bf16.msra.mxu0 %v141
    %163 = vmatprep.subr.bf16.mxu0 0
    %164 = vmatpush1.bf16.msra.mxu0 %v142
    %165 = vmatprep.subr.bf16.mxu0 0
    %166 = vmatpush1.bf16.msra.mxu0 0
    %167 = vmatprep.subr.bf16.mxu0 0
    %168 = vmatpush1.bf16.msra.mxu0 0
    %169 = vmatprep.subr.bf16.mxu0 0
    %170 = vmatpush1.bf16.msra.mxu0 0
    %171 = vmatprep.subr.bf16.mxu0 0
    %172 = vmatpush1.bf16.msra.mxu0 0
    %173 = vmatprep.subr.bf16.mxu0 0
    %174 = vmatpush1.bf16.msra.mxu0 0
    %175 = vmatprep.subr.bf16.mxu0 0
    %176 = vmatpush1.bf16.msra.mxu0 0
    %177 = vmatprep.subr.bf16.mxu0 0
    %178 = vmatpush1.bf16.msra.mxu0 0
    %179 = vmatprep.subr.bf16.mxu0 0
    %180 = vmatpush1.bf16.msra.mxu0 0
    %181 = vmatprep.subr.bf16.mxu0 0
    %182 = vmatpush1.bf16.msra.mxu0 0
    %183 = vmatprep.subr.bf16.mxu0 0
    %184 = vmatpush1.bf16.msra.mxu0 0
    %185 = vmatprep.mubr.bf16.mxu0 0
    %186 = vmatmul.mubr.bf16.gmra.mrb[0].mxu0 %v151
    %v187 = vpop.f32.mrb[0].mxu0
    %v188 = vadd.f32 0.0, %v187
    %v189 = vpop.f32.mrb[0].mxu0
    %v190 = vpop.f32.mrb[0].mxu0
    %v191 = vadd.f32 0.0, %v190
    %v192 = vpop.f32.mrb[0].mxu0
    %193 = vdwg.mxu0
    %v194 = vlaneseq
    %v195 = vshrl.u32 %v194, 7
    %v196 = vsub.s32 0, %v195
    %v197 = vrot.slane %v96, %v196
    %v198 = vadd.f32 %v197, %v188
    %v199 = vadd.f32 %v197, %v191
    %v200 = vsel %vm149, %v198, 0.0
    %201 = vadd.xlane.f32.xlu0 %v200
    %v202 = vpop.xlane.xlu0 %201
    %v203 = vsel %vm149, %v199, 0.0
    %204 = vadd.xlane.f32.xlu0 %v203
    %v205 = vpop.xlane.xlu0 %204
    %v206 = vrcp.pop 96.0
    %v207 = vmul.f32 %v202, %v206
    %v208 = vmul.f32 %v205, %v206
    %v209 = vmul.f32 %v198, %v198
    %v210 = vmul.f32 %v199, %v199
    %v211 = vsel %vm149, %v209, 0.0
    %212 = vadd.xlane.f32.xlu0 %v211
    %v213 = vpop.xlane.xlu0 %212
    %v214 = vsel %vm149, %v210, 0.0
    %215 = vadd.xlane.f32.xlu0 %v214
    %v216 = vpop.xlane.xlu0 %215
    %v217 = vmul.f32 %v213, %v206
    %v218 = vmul.f32 %v216, %v206
    %v219 = vmul.f32 %v207, %v207
    %v220 = vmul.f32 %v208, %v208
    %v221 = vsub.f32 %v217, %v219
    %v222 = vsub.f32 %v218, %v220
    %v223 = vmax.f32 %v221, 0.0
    %v224 = vmax.f32 %v222, 0.0
    %v225 = vsub.f32 %v198, %v207
    %v226 = vsub.f32 %v199, %v208
    %v227 = vadd.f32 %v223, 1e-05
    %v228 = vadd.f32 %v224, 1e-05
    %v229 = vrsqrt.pop %v227
    %v230 = vrsqrt.pop %v228
    %v231 = vmul.f32 %v225, %v229
    %v232 = vmul.f32 %v226, %v230
    %v233 = vlaneseq
    %v234 = vshrl.u32 %v233, 7
    %v235 = vsub.s32 0, %v234
    %v236 = vrot.slane %v97, %v235
    %v237 = vmul.f32 %v231, %v236
    %v238 = vmul.f32 %v232, %v236
    %v239 = vlaneseq
    %v240 = vshrl.u32 %v239, 7
    %v241 = vsub.s32 0, %v240
    %v242 = vrot.slane %v98, %v241
    %v243 = vadd.f32 %v237, %v242
    %v244 = vadd.f32 %v238, %v242
    %v245 = vmax.f32 %v243, 0.0
    %v246 = vmax.f32 %v244, 0.0
    %v247 = vpack.c.bf16 %v246, %v245
    %v248 = vld [vmem:[#allocation7] sm:$0xf]
    %v249 = vld [vmem:[#allocation7 + $0x4] sm:$0xf]
    %v250 = vld [vmem:[#allocation7 + $0x8] sm:$0xf]
    %v251 = vld [vmem:[#allocation7 + $0xc] sm:$0xf]
    %v252 = vld [vmem:[#allocation7 + $0x10] sm:$0xf]
    %v253 = vld [vmem:[#allocation7 + $0x14] sm:$0xf]
    %v254 = vld [vmem:[#allocation7 + $0x18] sm:$0xf]
    %v255 = vld [vmem:[#allocation7 + $0x1c] sm:$0xf]
    %v256 = vld [vmem:[#allocation7 + $0x20] sm:$0xf]
    %v257 = vld [vmem:[#allocation7 + $0x24] sm:$0xf]
    %v258 = vld [vmem:[#allocation7 + $0x28] sm:$0xf]
    %v259 = vld [vmem:[#allocation7 + $0x2c] sm:$0xf]
    %v260 = vlaneseq
    %v261 = vshrl.u32 %v260, 7
    %v262 = vsub.s32 0, %v261
    %v263 = vrot.slane %v99, %v262
    %v276 = vunpack.c.l.b16 %v248
    %v277 = vunpack.c.l.b16 %v249
    %v278 = vunpack.c.l.b16 %v250
    %v279 = vunpack.c.l.b16 %v251
    %v280 = vunpack.c.l.b16 %v252
    %v281 = vunpack.c.l.b16 %v253
    %v282 = vunpack.c.l.b16 %v254
    %v283 = vunpack.c.l.b16 %v255
    %v284 = vunpack.c.l.b16 %v256
    %v285 = vunpack.c.l.b16 %v257
    %v286 = vunpack.c.l.b16 %v258
    %v287 = vunpack.c.l.b16 %v259
    %v288 = vpack.c.b16 %v277, %v276
    %v289 = vpack.c.b16 %v279, %v278
    %v290 = vpack.c.b16 %v281, %v280
    %v291 = vpack.c.b16 %v283, %v282
    %v292 = vpack.c.b16 %v285, %v284
    %v293 = vpack.c.b16 %v287, %v286
    %v301 = vsel %vm149, %v247, 0
    %303 = vmatprep.subr.bf16.mxu0 0
    %304 = vmatpush1.bf16.msra.mxu0 %v288
    %305 = vmatprep.subr.bf16.mxu0 0
    %306 = vmatpush1.bf16.msra.mxu0 %v289
    %307 = vmatprep.subr.bf16.mxu0 0
    %308 = vmatpush1.bf16.msra.mxu0 %v290
    %309 = vmatprep.subr.bf16.mxu0 0
    %310 = vmatpush1.bf16.msra.mxu0 %v291
    %311 = vmatprep.subr.bf16.mxu0 0
    %312 = vmatpush1.bf16.msra.mxu0 %v292
    %313 = vmatprep.subr.bf16.mxu0 0
    %314 = vmatpush1.bf16.msra.mxu0 %v293
    %315 = vmatprep.subr.bf16.mxu0 0
    %316 = vmatpush1.bf16.msra.mxu0 0
    %317 = vmatprep.subr.bf16.mxu0 0
    %318 = vmatpush1.bf16.msra.mxu0 0
    %319 = vmatprep.subr.bf16.mxu0 0
    %320 = vmatpush1.bf16.msra.mxu0 0
    %321 = vmatprep.subr.bf16.mxu0 0
    %322 = vmatpush1.bf16.msra.mxu0 0
    %323 = vmatprep.subr.bf16.mxu0 0
    %324 = vmatpush1.bf16.msra.mxu0 0
    %325 = vmatprep.subr.bf16.mxu0 0
    %326 = vmatpush1.bf16.msra.mxu0 0
    %327 = vmatprep.subr.bf16.mxu0 0
    %328 = vmatpush1.bf16.msra.mxu0 0
    %329 = vmatprep.subr.bf16.mxu0 0
    %330 = vmatpush1.bf16.msra.mxu0 0
    %331 = vmatprep.subr.bf16.mxu0 0
    %332 = vmatpush1.bf16.msra.mxu0 0
    %333 = vmatprep.subr.bf16.mxu0 0
    %334 = vmatpush1.bf16.msra.mxu0 0
    %335 = vmatprep.mubr.bf16.mxu0 0
    %336 = vmatmul.mubr.bf16.gmra.mrb[0].mxu0 %v301
    %v337 = vpop.f32.mrb[0].mxu0
    %v338 = vadd.f32 %v263, %v337
    %v339 = vpop.f32.mrb[0].mxu0
    %v340 = vpop.f32.mrb[0].mxu0
    %v341 = vadd.f32 %v263, %v340
    %v342 = vpop.f32.mrb[0].mxu0
    %343 = vdwg.mxu0
    %v344 = vpack.c.bf16 %v341, %v338
    %v345 = vld [vmem:[#allocation10] sm:$0xf]
    %v346 = vld [vmem:[#allocation10 + $0x4] sm:$0xf]
    %v347 = vld [vmem:[#allocation10 + $0x8] sm:$0xf]
    %v348 = vld [vmem:[#allocation10 + $0xc] sm:$0xf]
    %v349 = vld [vmem:[#allocation10 + $0x10] sm:$0xf]
    %v350 = vld [vmem:[#allocation10 + $0x14] sm:$0xf]
    %v351 = vld [vmem:[#allocation10 + $0x18] sm:$0xf]
    %v352 = vld [vmem:[#allocation10 + $0x1c] sm:$0xf]
    %v353 = vld [vmem:[#allocation10 + $0x20] sm:$0xf]
    %v354 = vld [vmem:[#allocation10 + $0x24] sm:$0xf]
    %v355 = vld [vmem:[#allocation10 + $0x28] sm:$0xf]
    %v356 = vld [vmem:[#allocation10 + $0x2c] sm:$0xf]
    %v369 = vunpack.c.l.b16 %v345
    %v370 = vunpack.c.l.b16 %v346
    %v371 = vunpack.c.l.b16 %v347
    %v372 = vunpack.c.l.b16 %v348
    %v373 = vunpack.c.l.b16 %v349
    %v374 = vunpack.c.l.b16 %v350
    %v375 = vunpack.c.l.b16 %v351
    %v376 = vunpack.c.l.b16 %v352
    %v377 = vunpack.c.l.b16 %v353
    %v378 = vunpack.c.l.b16 %v354
    %v379 = vunpack.c.l.b16 %v355
    %v380 = vunpack.c.l.b16 %v356
    %v381 = vpack.c.b16 %v370, %v369
    %v382 = vpack.c.b16 %v372, %v371
    %v383 = vpack.c.b16 %v374, %v373
    %v384 = vpack.c.b16 %v376, %v375
    %v385 = vpack.c.b16 %v378, %v377
    %v386 = vpack.c.b16 %v380, %v379
    %v394 = vsel %vm149, %v344, 0
    %396 = vmatprep.subr.bf16.mxu0 0
    %397 = vmatpush1.bf16.msra.mxu0 %v381
    %398 = vmatprep.subr.bf16.mxu0 0
    %399 = vmatpush1.bf16.msra.mxu0 %v382
    %400 = vmatprep.subr.bf16.mxu0 0
    %401 = vmatpush1.bf16.msra.mxu0 %v383
    %402 = vmatprep.subr.bf16.mxu0 0
    %403 = vmatpush1.bf16.msra.mxu0 %v384
    %404 = vmatprep.subr.bf16.mxu0 0
    %405 = vmatpush1.bf16.msra.mxu0 %v385
    %406 = vmatprep.subr.bf16.mxu0 0
    %407 = vmatpush1.bf16.msra.mxu0 %v386
    %408 = vmatprep.subr.bf16.mxu0 0
    %409 = vmatpush1.bf16.msra.mxu0 0
    %410 = vmatprep.subr.bf16.mxu0 0
    %411 = vmatpush1.bf16.msra.mxu0 0
    %412 = vmatprep.subr.bf16.mxu0 0
    %413 = vmatpush1.bf16.msra.mxu0 0
    %414 = vmatprep.subr.bf16.mxu0 0
    %415 = vmatpush1.bf16.msra.mxu0 0
    %416 = vmatprep.subr.bf16.mxu0 0
    %417 = vmatpush1.bf16.msra.mxu0 0
    %418 = vmatprep.subr.bf16.mxu0 0
    %419 = vmatpush1.bf16.msra.mxu0 0
    %420 = vmatprep.subr.bf16.mxu0 0
    %421 = vmatpush1.bf16.msra.mxu0 0
    %422 = vmatprep.subr.bf16.mxu0 0
    %423 = vmatpush1.bf16.msra.mxu0 0
    %424 = vmatprep.subr.bf16.mxu0 0
    %425 = vmatpush1.bf16.msra.mxu0 0
    %426 = vmatprep.subr.bf16.mxu0 0
    %427 = vmatpush1.bf16.msra.mxu0 0
    %428 = vmatprep.mubr.bf16.mxu0 0
    %429 = vmatmul.mubr.bf16.gmra.mrb[0].mxu0 %v394
    %v430 = vpop.f32.mrb[0].mxu0
    %v431 = vadd.f32 0.0, %v430
    %v432 = vpop.f32.mrb[0].mxu0
    %v433 = vpop.f32.mrb[0].mxu0
    %v434 = vadd.f32 0.0, %v433
    %v435 = vpop.f32.mrb[0].mxu0
    %436 = vdwg.mxu0
    %v437 = vlaneseq
    %v438 = vshrl.u32 %v437, 7
    %v439 = vsub.s32 0, %v438
    %v440 = vrot.slane %v100, %v439
    %v441 = vadd.f32 %v440, %v431
    %v442 = vadd.f32 %v440, %v434
    %v443 = vld [vmem:[#allocation8] sm:$0xf]
    %v444 = vld [vmem:[#allocation8 + $0x4] sm:$0xf]
    %v445 = vld [vmem:[#allocation8 + $0x8] sm:$0xf]
    %v446 = vld [vmem:[#allocation8 + $0xc] sm:$0xf]
    %v447 = vld [vmem:[#allocation8 + $0x10] sm:$0xf]
    %v448 = vld [vmem:[#allocation8 + $0x14] sm:$0xf]
    %v449 = vld [vmem:[#allocation8 + $0x18] sm:$0xf]
    %v450 = vld [vmem:[#allocation8 + $0x1c] sm:$0xf]
    %v451 = vld [vmem:[#allocation8 + $0x20] sm:$0xf]
    %v452 = vld [vmem:[#allocation8 + $0x24] sm:$0xf]
    %v453 = vld [vmem:[#allocation8 + $0x28] sm:$0xf]
    %v454 = vld [vmem:[#allocation8 + $0x2c] sm:$0xf]
    %v467 = vunpack.c.l.b16 %v443
    %v468 = vunpack.c.l.b16 %v444
    %v469 = vunpack.c.l.b16 %v445
    %v470 = vunpack.c.l.b16 %v446
    %v471 = vunpack.c.l.b16 %v447
    %v472 = vunpack.c.l.b16 %v448
    %v473 = vunpack.c.l.b16 %v449
    %v474 = vunpack.c.l.b16 %v450
    %v475 = vunpack.c.l.b16 %v451
    %v476 = vunpack.c.l.b16 %v452
    %v477 = vunpack.c.l.b16 %v453
    %v478 = vunpack.c.l.b16 %v454
    %v479 = vpack.c.b16 %v468, %v467
    %v480 = vpack.c.b16 %v470, %v469
    %v481 = vpack.c.b16 %v472, %v471
    %v482 = vpack.c.b16 %v474, %v473
    %v483 = vpack.c.b16 %v476, %v475
    %v484 = vpack.c.b16 %v478, %v477
    %491 = vmatprep.subr.bf16.mxu0 0
    %492 = vmatpush1.bf16.msra.mxu0 %v479
    %493 = vmatprep.subr.bf16.mxu0 0
    %494 = vmatpush1.bf16.msra.mxu0 %v480
    %495 = vmatprep.subr.bf16.mxu0 0
    %496 = vmatpush1.bf16.msra.mxu0 %v481
    %497 = vmatprep.subr.bf16.mxu0 0
    %498 = vmatpush1.bf16.msra.mxu0 %v482
    %499 = vmatprep.subr.bf16.mxu0 0
    %500 = vmatpush1.bf16.msra.mxu0 %v483
    %501 = vmatprep.subr.bf16.mxu0 0
    %502 = vmatpush1.bf16.msra.mxu0 %v484
    %503 = vmatprep.subr.bf16.mxu0 0
    %504 = vmatpush1.bf16.msra.mxu0 0
    %505 = vmatprep.subr.bf16.mxu0 0
    %506 = vmatpush1.bf16.msra.mxu0 0
    %507 = vmatprep.subr.bf16.mxu0 0
    %508 = vmatpush1.bf16.msra.mxu0 0
    %509 = vmatprep.subr.bf16.mxu0 0
    %510 = vmatpush1.bf16.msra.mxu0 0
    %511 = vmatprep.subr.bf16.mxu0 0
    %512 = vmatpush1.bf16.msra.mxu0 0
    %513 = vmatprep.subr.bf16.mxu0 0
    %514 = vmatpush1.bf16.msra.mxu0 0
    %515 = vmatprep.subr.bf16.mxu0 0
    %516 = vmatpush1.bf16.msra.mxu0 0
    %517 = vmatprep.subr.bf16.mxu0 0
    %518 = vmatpush1.bf16.msra.mxu0 0
    %519 = vmatprep.subr.bf16.mxu0 0
    %520 = vmatpush1.bf16.msra.mxu0 0
    %521 = vmatprep.subr.bf16.mxu0 0
    %522 = vmatpush1.bf16.msra.mxu0 0
    %523 = vmatprep.mubr.bf16.mxu0 0
    %524 = vmatmul.mubr.bf16.gmra.mrb[0].mxu0 %v151
    %v525 = vpop.f32.mrb[0].mxu0
    %v526 = vadd.f32 0.0, %v525
    %v527 = vpop.f32.mrb[0].mxu0
    %v528 = vpop.f32.mrb[0].mxu0
    %v529 = vadd.f32 0.0, %v528
    %v530 = vpop.f32.mrb[0].mxu0
    %531 = vdwg.mxu0
    %v532 = vadd.f32 %v441, %v526
    %v533 = vadd.f32 %v442, %v529
    %v534 = vxor.u32 %v532, 2147483648
    %v535 = vxor.u32 %v533, 2147483648
    %v536 = vmul.f32 %v534, 1.442695
    %v537 = vpow.pop %v536
    %v538 = vmul.f32 %v535, 1.442695
    %v539 = vpow.pop %v538
    %v540 = vadd.f32 %v537, 1.0
    %v541 = vadd.f32 %v539, 1.0
    %v542 = vrcp.pop %v540
    %v543 = vmul.f32 1.0, %v542
    %v544 = vrcp.pop %v541
    %v545 = vmul.f32 1.0, %v544
    %v546 = vsub.f32 %v338, %v93
    %v547 = vsub.f32 %v341, %v94
    %v548 = vmul.f32 %v543, %v546
    %v549 = vmul.f32 %v545, %v547
    %v550 = vadd.f32 %v93, %v548
    %v551 = vadd.f32 %v94, %v549
    %552 = vst.msk [vmem:[#allocation11] sm:$0xff] %vm149, %v550
    %553 = vst.msk [vmem:[#allocation11 + $0x8] sm:$0xff] %vm149, %v551
    // Predicated region
    $region46: #{tpu_custom_call.1} parent=1 // pred_check
      _
    $region47: #{tpu_custom_call.1} parent=1 // pred_check_branch
      %555 = sbr.rel (0) target = $region49
    $region48: #{tpu_custom_call.1} parent=1 // pred_region
      %s557 = ssub.s32 256, 256
      %558 = vsyncadd [#allocation4], %s557
      %s559 = sshll.u32 [#allocation11], 4
      %s560 = int_to_ptr.vmem [resolvable:$true] %s559
      %565 = dma.vmem_to_hbm [thread:$0]  %s560, 256, %s6, [#allocation4], 128, 128, 8
    $region49: #{tpu_custom_call.1} parent=1 // pred_fallthru
      _
    // Predicated region
    $region50: #{tpu_custom_call.1} parent=1 // pred_check
      _
    $region51: #{tpu_custom_call.1} parent=1 // pred_check_branch
      %567 = sbr.rel (0) target = $region53
    $region52: #{tpu_custom_call.1} parent=1 // pred_region
      %568 = dma.done [#allocation4], 256
    $region53: #{tpu_custom_call.1} parent=1 // pred_fallthru
      _
    %569 = vsyncpa [#allocation3], 1
    %570 = vsyncpa [#allocation6], 1
    %571 = vsyncpa [#allocation9], 1
    %572 = vsyncpa [#allocation4], 1

</llo_original>
